<compile_context>
chip_gen: v7x
topology: tpu7x:2x2x1
jax: 0.10.0
libtpu: 0.0.40
codegen_flags: <defaults>
</compile_context>

<pallas_src>
import math
import jax
import jax.numpy as jnp
from jax import lax
from jax.experimental import pallas as pl
from jax.experimental.pallas import tpu as pltpu


# --------------------------------------------------------------------------- #
# Stage 1: hoisted input projection  gates_x = x @ W_ih^T + (b_ih + b_hh)
# --------------------------------------------------------------------------- #
def _input_proj_kernel(x_ref, wih_ref, b_ref, gx_ref):
    # (m_blk, I) @ (I, 4H) + (1, 4H) -> (m_blk, 4H); one MXU matmul per block.
    gx_ref[...] = (
        jnp.dot(x_ref[...], wih_ref[...], preferred_element_type=jnp.float32)
        + b_ref[...]
    )


# --------------------------------------------------------------------------- #
# Stage 2: time-blocked recurrence (only h @ W_hh^T per timestep)
# --------------------------------------------------------------------------- #
def _lstm_recurrence_kernel(gx_ref, whh_ref, out_ref, h_out_ref, c_out_ref,
                            h_scr, c_scr):
    t_blk = pl.program_id(1)          # time-block index (sequential axis)

    @pl.when(t_blk == 0)
    def _():                          # reset state at the start of each batch block
        h_scr[...] = jnp.zeros_like(h_scr)
        c_scr[...] = jnp.zeros_like(c_scr)

    T = gx_ref.shape[0]               # timesteps in this block (static)
    H = h_scr.shape[-1]
    whh = whh_ref[...]                # (H, 4H), hoisted out of the step loop

    def step(s, carry):
        h, c = carry
        # Precomputed input projection + recurrent matmul (the only dot on the
        # sequential critical path).
        gates = gx_ref[s] + jnp.dot(h, whh, preferred_element_type=jnp.float32)
        # PyTorch gate order: i, f, g, o.  Slices are lane-aligned when H % 128 == 0
        # (true at production hidden sizes); at H=32 this is a minor in-vreg select.
        i_g = jax.nn.sigmoid(gates[:, 0 * H:1 * H])
        f_g = jax.nn.sigmoid(gates[:, 1 * H:2 * H])
        g_g = jnp.tanh(gates[:, 2 * H:3 * H])
        o_g = jax.nn.sigmoid(gates[:, 3 * H:4 * H])
        c_new = f_g * c + i_g * g_g
        h_new = o_g * jnp.tanh(c_new)
        # Buffered in the VMEM output block; written back to HBM once per grid step.
        out_ref[s] = h_new.astype(out_ref.dtype)
        return h_new, c_new

    h, c = lax.fori_loop(0, T, step, (h_scr[...], c_scr[...]), unroll=True)
    h_scr[...] = h
    c_scr[...] = c

    @pl.when(t_blk == pl.num_programs(1) - 1)
    def _():
        h_out_ref[...] = h.astype(h_out_ref.dtype)
        c_out_ref[...] = c.astype(c_out_ref.dtype)


# --------------------------------------------------------------------------- #
# Wrapper
# --------------------------------------------------------------------------- #
def lstm_encoder_forward(x, params, *, time_block=None, batch_block=None):
    """x: (B, S, input_size) float32.  Returns (output, (h, c)) like the module."""
    B, S, I = x.shape
    w_ih, w_hh, b_ih, b_hh = params           # (4H, I), (4H, H), (4H,), (4H,)
    H4, H = w_hh.shape
    assert H4 == 4 * H

    T_blk = S if time_block is None else time_block
    B_blk = B if batch_block is None else batch_block
    assert S % T_blk == 0 and B % B_blk == 0
    nt = S // T_blk
    nb = B // B_blk

    wih_t = jnp.transpose(w_ih)               # (I, 4H)
    whh_t = jnp.transpose(w_hh)               # (H, 4H)
    bias = (b_ih + b_hh).reshape(1, 4 * H)    # folded into the input projection

    x_tm = jnp.transpose(x, (1, 0, 2))        # (S, B, I) time-major
    x2d = x_tm.reshape(S * B, I)              # (S*B, I)  -> one big matmul

    # ---- stage 1: input projection (parallel over time blocks) ----------------
    m_blk = T_blk * B
    gates_x_2d = pl.pallas_call(
        _input_proj_kernel,
        out_shape=jax.ShapeDtypeStruct((S * B, 4 * H), jnp.float32),
        grid_spec=pltpu.PrefetchScalarGridSpec(
            num_scalar_prefetch=0,
            grid=(nt,),
            in_specs=[
                pl.BlockSpec((m_blk, I), lambda m: (m, 0)),      # x rows
                pl.BlockSpec((I, 4 * H), lambda m: (0, 0)),      # W_ih^T (resident)
                pl.BlockSpec((1, 4 * H), lambda m: (0, 0)),      # bias
            ],
            out_specs=pl.BlockSpec((m_blk, 4 * H), lambda m: (m, 0)),
        ),
        compiler_params=pltpu.CompilerParams(
            dimension_semantics=("parallel",),
            vmem_limit_bytes=32 * 1024 * 1024,
        ),
    )(x2d, wih_t, bias)
    gates_x = gates_x_2d.reshape(S, B, 4 * H)                    # time-major gates

    # ---- stage 2: recurrence (batch parallel, time sequential) ----------------
    out_tm, h_last, c_last = pl.pallas_call(
        _lstm_recurrence_kernel,
        out_shape=(
            jax.ShapeDtypeStruct((S, B, H), jnp.float32),
            jax.ShapeDtypeStruct((B, H), jnp.float32),
            jax.ShapeDtypeStruct((B, H), jnp.float32),
        ),
        grid_spec=pltpu.PrefetchScalarGridSpec(
            num_scalar_prefetch=0,
            grid=(nb, nt),
            in_specs=[
                pl.BlockSpec((T_blk, B_blk, 4 * H), lambda b, t: (t, b, 0)),  # gates_x
                pl.BlockSpec((H, 4 * H), lambda b, t: (0, 0)),                # W_hh^T
            ],
            out_specs=[
                pl.BlockSpec((T_blk, B_blk, H), lambda b, t: (t, b, 0)),      # output
                pl.BlockSpec((B_blk, H), lambda b, t: (b, 0)),                # h (resident)
                pl.BlockSpec((B_blk, H), lambda b, t: (b, 0)),                # c (resident)
            ],
            scratch_shapes=[
                pltpu.VMEM((B_blk, H), jnp.float32),   # h state
                pltpu.VMEM((B_blk, H), jnp.float32),   # c state
            ],
        ),
        compiler_params=pltpu.CompilerParams(
            dimension_semantics=("parallel", "arbitrary"),   # batch || , time sequential
            vmem_limit_bytes=32 * 1024 * 1024,
        ),
    )(gates_x, whh_t)

    output = jnp.transpose(out_tm, (1, 0, 2))            # (B, S, H)
    h = h_last.reshape(1, B, H)                          # num_layers = 1
    c = c_last.reshape(1, B, H)
    return output, (h, c)


# --------------------------------------------------------------------------- #
# Pure-JAX reference + init (match nn.LSTM, batch_first)
# --------------------------------------------------------------------------- #
def _lstm_reference(x, params):
    w_ih, w_hh, b_ih, b_hh = params
    H = w_hh.shape[1]
    B = x.shape[0]

    def step(carry, x_t):
        h, c = carry
        gates = x_t @ w_ih.T + h @ w_hh.T + b_ih + b_hh
        i = jax.nn.sigmoid(gates[:, 0 * H:1 * H])
        f = jax.nn.sigmoid(gates[:, 1 * H:2 * H])
        g = jnp.tanh(gates[:, 2 * H:3 * H])
        o = jax.nn.sigmoid(gates[:, 3 * H:4 * H])
        c = f * c + i * g
        h = o * jnp.tanh(c)
        return (h, c), h

    h0 = jnp.zeros((B, H), jnp.float32)
    c0 = jnp.zeros((B, H), jnp.float32)
    (h, c), ys = jax.lax.scan(step, (h0, c0), jnp.transpose(x, (1, 0, 2)))
    return jnp.transpose(ys, (1, 0, 2)), (h[None], c[None])


def init_lstm_params(key, input_size, hidden_size):
    """Deterministic init matching nn.LSTM's U(-1/sqrt(H), 1/sqrt(H))."""
    k = 1.0 / math.sqrt(hidden_size)
    k1, k2, k3, k4 = jax.random.split(key, 4)
    w_ih = jax.random.uniform(k1, (4 * hidden_size, input_size), jnp.float32, -k, k)
    w_hh = jax.random.uniform(k2, (4 * hidden_size, hidden_size), jnp.float32, -k, k)
    b_ih = jax.random.uniform(k3, (4 * hidden_size,), jnp.float32, -k, k)
    b_hh = jax.random.uniform(k4, (4 * hidden_size,), jnp.float32, -k, k)
    return w_ih, w_hh, b_ih, b_hh


if __name__ == "__main__":
    B, S, I, H = 2, 8, 16, 32

    key = jax.random.PRNGKey(0)
    kx, kp = jax.random.split(key)
    x = jax.random.normal(kx, (B, S, I), jnp.float32)
    params = init_lstm_params(kp, I, H)

    output, (h, c) = lstm_encoder_forward(x, params)
    jax.block_until_ready((output, h, c))

    # sanity check against pure-JAX reference
    ref_out, (ref_h, ref_c) = _lstm_reference(x, params)
    assert output.shape == (B, S, H) and h.shape == (1, B, H) and c.shape == (1, B, H)
    assert jnp.allclose(output, ref_out, atol=1e-5, rtol=1e-5)
    assert jnp.allclose(h, ref_h, atol=1e-5, rtol=1e-5)
    assert jnp.allclose(c, ref_c, atol=1e-5, rtol=1e-5)

    print("KERNEL_OK")
</pallas_src>

<mosaic_0001>
module attributes {stable_mosaic.version = 11 : i64} {
  func.func @_input_proj_kernel(%arg0: i32, %arg1: memref<16x16xf32, #tpu.memory_space<vmem>>, %arg2: memref<16x128xf32, #tpu.memory_space<vmem>>, %arg3: memref<1x128xf32, #tpu.memory_space<vmem>>, %arg4: memref<16x128xf32, #tpu.memory_space<vmem>>) attributes {dimension_semantics = [#tpu.dimension_semantics<parallel>], iteration_bounds = array<i64: 1>, scalar_prefetch = 0 : i64, scratch_operands = 0 : i64, tpu.core_type = #tpu.core_type<tc>, window_params = [{transform_indices = @transform_0, window_bounds = array<i64: 16, 16>}, {pipeline_mode = #tpu.pipeline_mode<synchronous>, transform_indices = @transform_1, window_bounds = array<i64: 16, 128>}, {pipeline_mode = #tpu.pipeline_mode<synchronous>, transform_indices = @transform_2, window_bounds = array<i64: 1, 128>}, {transform_indices = @transform_3, window_bounds = array<i64: 16, 128>}]} {
    %c0 = arith.constant 0 : index
    %c0_0 = arith.constant 0 : index
    %0 = vector.load %arg1[%c0, %c0_0] : memref<16x16xf32, #tpu.memory_space<vmem>>, vector<16x16xf32>
    %c0_1 = arith.constant 0 : index
    %c0_2 = arith.constant 0 : index
    %1 = vector.load %arg2[%c0_1, %c0_2] : memref<16x128xf32, #tpu.memory_space<vmem>>, vector<16x128xf32>
    %cst = arith.constant dense<0.000000e+00> : vector<16x128xf32>
    %2 = tpu.matmul %0, %1, %cst {dimension_numbers = #tpu.dot_dimension_numbers<[1], [0], [0], [1], [0, 0, 1, 1], [], []>} : vector<16x16xf32>, vector<16x128xf32>, vector<16x128xf32> -> vector<16x128xf32>
    %c0_3 = arith.constant 0 : index
    %c0_4 = arith.constant 0 : index
    %3 = vector.load %arg3[%c0_3, %c0_4] : memref<1x128xf32, #tpu.memory_space<vmem>>, vector<1x128xf32>
    %4 = vector.broadcast %3 : vector<1x128xf32> to vector<16x128xf32>
    %5 = arith.addf %2, %4 : vector<16x128xf32>
    %c0_5 = arith.constant 0 : index
    %c0_6 = arith.constant 0 : index
    %6 = vector.load %arg4[%c0_5, %c0_6] : memref<16x128xf32, #tpu.memory_space<vmem>>, vector<16x128xf32>
    tpu.vector_store %arg4[%c0_5, %c0_6], %5 {strides = array<i32>} : memref<16x128xf32, #tpu.memory_space<vmem>>, vector<16x128xf32>,
    return
  }
  func.func @transform_0(%arg0: i32) -> (i32, i32) {
    %c0_i32 = arith.constant 0 : i32
    %c0_i32_0 = arith.constant 0 : i32
    return %arg0, %c0_i32 : i32, i32
  }
  func.func @transform_1(%arg0: i32) -> (i32, i32) {
    %c0_i32 = arith.constant 0 : i32
    %c0_i32_0 = arith.constant 0 : i32
    %c0_i32_1 = arith.constant 0 : i32
    return %c0_i32, %c0_i32_0 : i32, i32
  }
  func.func @transform_2(%arg0: i32) -> (i32, i32) {
    %c0_i32 = arith.constant 0 : i32
    %c0_i32_0 = arith.constant 0 : i32
    %c0_i32_1 = arith.constant 0 : i32
    return %c0_i32, %c0_i32_0 : i32, i32
  }
  func.func @transform_3(%arg0: i32) -> (i32, i32) {
    %c0_i32 = arith.constant 0 : i32
    %c0_i32_0 = arith.constant 0 : i32
    return %arg0, %c0_i32 : i32, i32
  }
}

</mosaic_0001>

<llo_original>
// kernel: tpu_custom_call.1
$region0: #{tpu_custom_call.1}
  #allocation0 [shape = 'u32[]', space=smem, size = 0x4, offset = 0x4, fixed_abs, tag = 'smem constant byte address 0x4 - core index']
  #allocation1 [shape = 'u32[144,128]{1,0:T(1,128)}', space=vmem, size = 0x12000, scoped, tag = 'internal scratch']
  %s0 = inlined_call_operand.hbm [shape: f32[16,16], index: 0, kind: input, shape index: {}]
  %s1 = inlined_call_operand.hbm [shape: f32[16,128], index: 1, kind: input, shape index: {}]
  %s2 = inlined_call_operand.vmem [shape: f32[1,128], index: 2, kind: input, shape index: {}]
  %s3 = inlined_call_operand.hbm [shape: f32[16,128], index: 3, kind: output, shape index: {}]
  %s4 = sld [smem:[#allocation0]]
  $region30: #{tpu_custom_call.1} parent=0
    _
  %s6 = ssub.s32 1, %s4
  %s7 = scalar_select 0, %s6, %s4
  $region1: #{tpu_custom_call.1} parent=0
    #allocation2 [shape = 'u8[8192]{0}', space=vmem, size = 0x2000, scoped, tag = 'input window, operand 0, single buffered']
    #allocation3 [shape = 's32[1]{0}', space=sflag, size = 0x4, scoped, tag = 'scoped memory for tpu_custom_call.1']
    #allocation4 [shape = 's32[1]{0}', space=sflag, size = 0x4, scoped, tag = 'scoped memory for tpu_custom_call.1']
    #allocation5 [shape = 'u8[8192]{0}', space=vmem, size = 0x2000, scoped, tag = 'input window, operand 1, single buffered']
    #allocation6 [shape = 's32[1]{0}', space=sflag, size = 0x4, scoped, tag = 'scoped memory for tpu_custom_call.1']
    #allocation7 [shape = 'u8[8192]{0}', space=vmem, size = 0x2000, scoped, tag = 'output window, operand 0, single buffered']
    %8 = vsyncpa [#allocation3], 0
    %9 = vsyncpa [#allocation6], 0
    %10 = vsyncpa [#allocation4], 0
    // Predicated region
    $region2: #{tpu_custom_call.1} parent=1 // pred_check
      _
    $region3: #{tpu_custom_call.1} parent=1 // pred_check_branch
      %12 = sbr.rel (0) target = $region5
    $region4: #{tpu_custom_call.1} parent=1 // pred_region
      %s14 = ssub.s32 256, 256
      %15 = vsyncadd [#allocation3], %s14
      %s16 = sshll.u32 [#allocation2], 4
      %s17 = int_to_ptr.vmem [resolvable:$true] %s16
      %22 = dma.hbm_to_vmem [thread:$0]  %s0, 256, %s17, [#allocation3], 128, 128, 8
    $region5: #{tpu_custom_call.1} parent=1 // pred_fallthru
      _
    // Predicated region
    $region6: #{tpu_custom_call.1} parent=1 // pred_check
      _
    $region7: #{tpu_custom_call.1} parent=1 // pred_check_branch
      %24 = sbr.rel (0) target = $region9
    $region8: #{tpu_custom_call.1} parent=1 // pred_region
      %s26 = ssub.s32 256, 256
      %27 = vsyncadd [#allocation6], %s26
      %s28 = sshll.u32 [#allocation5], 4
      %s29 = int_to_ptr.vmem [resolvable:$true] %s28
      %34 = dma.hbm_to_vmem [thread:$0]  %s1, 256, %s29, [#allocation6], 128, 128, 8
    $region9: #{tpu_custom_call.1} parent=1 // pred_fallthru
      _
    // Predicated region
    $region10: #{tpu_custom_call.1} parent=1 // pred_check
      _
    $region11: #{tpu_custom_call.1} parent=1 // pred_check_branch
      %36 = sbr.rel (0) target = $region13
    $region12: #{tpu_custom_call.1} parent=1 // pred_region
      _
    $region13: #{tpu_custom_call.1} parent=1 // pred_fallthru
      _
    // Predicated region
    $region14: #{tpu_custom_call.1} parent=1 // pred_check
      _
    $region15: #{tpu_custom_call.1} parent=1 // pred_check_branch
      %38 = sbr.rel (0) target = $region17
    $region16: #{tpu_custom_call.1} parent=1 // pred_region
      %39 = dma.done [#allocation3], 256
    $region17: #{tpu_custom_call.1} parent=1 // pred_fallthru
      _
    // Predicated region
    $region18: #{tpu_custom_call.1} parent=1 // pred_check
      _
    $region19: #{tpu_custom_call.1} parent=1 // pred_check_branch
      %41 = sbr.rel (0) target = $region21
    $region20: #{tpu_custom_call.1} parent=1 // pred_region
      %42 = dma.done [#allocation6], 256
    $region21: #{tpu_custom_call.1} parent=1 // pred_fallthru
      _
    %v43 = vld [vmem:[#allocation2] sm:$0xff]
    %v44 = vld [vmem:[#allocation2 + $0x8] sm:$0xff]
    %v45 = vld [vmem:[#allocation5] sm:$0xff]
    %v46 = vld [vmem:[#allocation5 + $0x8] sm:$0xff]
    %v47 = vld [vmem:[%s2] sm:$0x1]
    %v49 = vlaneseq
    %v50 = vshrl.u32 %v49, 7
    %v51 = vsub.s32 0, %v50
    %v52 = vrot.slane %v47, %v51
    %vm54 = vcmask 130048
    %v56 = vsel %vm54, %v43, 0
    %v59 = vsel %vm54, %v44, 0
    %61 = vmatprep.subr.mxu0 0.0
    %62 = vmatpush1.msra.mxu0 %v45
    %63 = vmatprep.subr.mxu0 0.0
    %64 = vmatpush1.msra.mxu0 %v46
    %65 = vmatprep.subr.mxu0 0.0
    %66 = vmatpush1.msra.mxu0 0.0
    %67 = vmatprep.subr.mxu0 0.0
    %68 = vmatpush1.msra.mxu0 0.0
    %69 = vmatprep.subr.mxu0 0.0
    %70 = vmatpush1.msra.mxu0 0.0
    %71 = vmatprep.subr.mxu0 0.0
    %72 = vmatpush1.msra.mxu0 0.0
    %73 = vmatprep.subr.mxu0 0.0
    %74 = vmatpush1.msra.mxu0 0.0
    %75 = vmatprep.subr.mxu0 0.0
    %76 = vmatpush1.msra.mxu0 0.0
    %77 = vmatprep.subr.mxu0 0.0
    %78 = vmatpush1.msra.mxu0 0.0
    %79 = vmatprep.subr.mxu0 0.0
    %80 = vmatpush1.msra.mxu0 0.0
    %81 = vmatprep.subr.mxu0 0.0
    %82 = vmatpush1.msra.mxu0 0.0
    %83 = vmatprep.subr.mxu0 0.0
    %84 = vmatpush1.msra.mxu0 0.0
    %85 = vmatprep.subr.mxu0 0.0
    %86 = vmatpush1.msra.mxu0 0.0
    %87 = vmatprep.subr.mxu0 0.0
    %88 = vmatpush1.msra.mxu0 0.0
    %89 = vmatprep.subr.mxu0 0.0
    %90 = vmatpush1.msra.mxu0 0.0
    %91 = vmatprep.subr.mxu0 0.0
    %92 = vmatpush1.msra.mxu0 0.0
    %93 = vmatprep.subr.mxu0 0.0
    %94 = vmatpush1.msra.mxu0 0.0
    %95 = vmatprep.subr.mxu0 0.0
    %96 = vmatpush1.msra.mxu0 0.0
    %97 = vmatprep.subr.mxu0 0.0
    %98 = vmatpush1.msra.mxu0 0.0
    %99 = vmatprep.subr.mxu0 0.0
    %100 = vmatpush1.msra.mxu0 0.0
    %101 = vmatprep.subr.mxu0 0.0
    %102 = vmatpush1.msra.mxu0 0.0
    %103 = vmatprep.subr.mxu0 0.0
    %104 = vmatpush1.msra.mxu0 0.0
    %105 = vmatprep.subr.mxu0 0.0
    %106 = vmatpush1.msra.mxu0 0.0
    %107 = vmatprep.subr.mxu0 0.0
    %108 = vmatpush1.msra.mxu0 0.0
    %109 = vmatprep.subr.mxu0 0.0
    %110 = vmatpush1.msra.mxu0 0.0
    %111 = vmatprep.subr.mxu0 0.0
    %112 = vmatpush1.msra.mxu0 0.0
    %113 = vmatprep.subr.mxu0 0.0
    %114 = vmatpush1.msra.mxu0 0.0
    %115 = vmatprep.subr.mxu0 0.0
    %116 = vmatpush1.msra.mxu0 0.0
    %117 = vmatprep.subr.mxu0 0.0
    %118 = vmatpush1.msra.mxu0 0.0
    %119 = vmatprep.subr.mxu0 0.0
    %120 = vmatpush1.msra.mxu0 0.0
    %121 = vmatprep.subr.mxu0 0.0
    %122 = vmatpush1.msra.mxu0 0.0
    %123 = vmatprep.subr.mxu0 0.0
    %124 = vmatpush1.msra.mxu0 0.0
    %125 = vmatprep.mubr.f32.mxu0 0.0
    %126 = vmatmul.mubr.f32.gmra.mrb[0].mxu0 %v56
    %v127 = vpop.f32.mrb[0].mxu0
    %v128 = vadd.f32 %v52, %v127
    %v129 = vpop.f32.mrb[0].mxu0
    %130 = vmatprep.mubr.f32.mxu0 0.0
    %131 = vmatmul.mubr.f32.gmra.mrb[0].mxu0 %v59
    %v132 = vpop.f32.mrb[0].mxu0
    %v133 = vadd.f32 %v52, %v132
    %v134 = vpop.f32.mrb[0].mxu0
    %135 = vdwg.mxu0
    %136 = vst [vmem:[#allocation7] sm:$0xff] %v128
    %137 = vst [vmem:[#allocation7 + $0x8] sm:$0xff] %v133
    // Predicated region
    $region22: #{tpu_custom_call.1} parent=1 // pred_check
      _
    $region23: #{tpu_custom_call.1} parent=1 // pred_check_branch
      %139 = sbr.rel (0) target = $region25
    $region24: #{tpu_custom_call.1} parent=1 // pred_region
      %s141 = ssub.s32 256, 256
      %142 = vsyncadd [#allocation4], %s141
      %s143 = sshll.u32 [#allocation7], 4
      %s144 = int_to_ptr.vmem [resolvable:$true] %s143
      %149 = dma.vmem_to_hbm [thread:$0]  %s144, 256, %s3, [#allocation4], 128, 128, 8
    $region25: #{tpu_custom_call.1} parent=1 // pred_fallthru
      _
    // Predicated region
    $region26: #{tpu_custom_call.1} parent=1 // pred_check
      _
    $region27: #{tpu_custom_call.1} parent=1 // pred_check_branch
      %151 = sbr.rel (0) target = $region29
    $region28: #{tpu_custom_call.1} parent=1 // pred_region
      %152 = dma.done [#allocation4], 256
    $region29: #{tpu_custom_call.1} parent=1 // pred_fallthru
      _
    %153 = vsyncpa [#allocation3], 1
    %154 = vsyncpa [#allocation6], 1
    %155 = vsyncpa [#allocation4], 1

</llo_original>
